<compile_context>
chip_gen: v5e
topology: v5e:2x2
jax: 0.10.0
libtpu: 0.0.40
codegen_flags: <defaults>
</compile_context>

<pallas_src>
import functools

import jax
import jax.numpy as jnp
from jax.experimental import pallas as pl
from jax.experimental.pallas import tpu as pltpu


def _round_up(x, m):
    return (x + m - 1) // m * m


def _cdiv(a, b):
    return (a + b - 1) // b


# Double-buffered VMEM working-set target (bytes).  Conservative for v7x's
# 64 MiB per-TC VMEM; generous headroom on v5e/v6e (128 MiB).
_VMEM_BUDGET = 20 * 1024 * 1024
# Max double-buffered bf16 W^T footprint allowed on the resident fast path.
_RESIDENT_W_LIMIT = 8 * 1024 * 1024
_VMEM_LIMIT_BYTES = 32 * 1024 * 1024


# ---------------------------------------------------------------------------
# Fast path kernel: W^T and bias fully resident (tk = K, tn = N_pad).
# 1-D grid over M tiles; no accumulator, single fused store.
# ---------------------------------------------------------------------------
def _resident_kernel(x_ref, w_ref, b_ref, o_ref):
    # x_ref: (tm, K) f32   w_ref: (K, N_pad) bf16   b_ref: (1, N_pad) f32
    acc = jnp.dot(
        x_ref[...].astype(jnp.bfloat16), w_ref[...],
        preferred_element_type=jnp.float32,
    )
    o_ref[...] = (acc + b_ref[...]).astype(o_ref.dtype)


# ---------------------------------------------------------------------------
# General path kernel: canonical tiled GEMM with f32 VMEM accumulator.
# Used only when K*N is too large to keep W^T resident.
# ---------------------------------------------------------------------------
def _tiled_kernel(x_ref, w_ref, b_ref, o_ref, acc_ref):
    @pl.when(pl.program_id(2) == 0)
    def _():
        acc_ref[...] = jnp.zeros_like(acc_ref)

    acc_ref[...] += jnp.dot(
        x_ref[...].astype(jnp.bfloat16), w_ref[...],
        preferred_element_type=jnp.float32,
    )

    @pl.when(pl.program_id(2) == pl.num_programs(2) - 1)
    def _():
        o_ref[...] = (acc_ref[...] + b_ref[...]).astype(o_ref.dtype)


def _resident_path(x2d, wt, b2d, M, K, N_pad):
    # M-tile selection: as big as the VMEM budget allows (<= 512), and split
    # into >= 2 tiles when M is large enough so both v7x TensorCores get work.
    per_row = 2 * (K * 4 + N_pad * 4)               # x + out tiles, f32, double-buffered
    fixed = 2 * (K * N_pad * 2 + N_pad * 4)         # resident W^T (bf16) + bias
    tm_max = max(8, int((_VMEM_BUDGET - fixed) // per_row) // 8 * 8)
    tm_max = min(512, tm_max)
    if M <= 256:
        tm = min(tm_max, _round_up(M, 8))
    else:
        tm = min(tm_max, _round_up(_cdiv(M, 2), 8))
    tm = max(8, tm)
    grid_m = _cdiv(M, tm)

    cost = pl.CostEstimate(
        flops=2 * M * K * N_pad + M * N_pad,
        transcendentals=0,
        bytes_accessed=4 * M * K + 2 * K * N_pad + 4 * N_pad + 4 * M * N_pad,
    )

    return pl.pallas_call(
        _resident_kernel,
        out_shape=jax.ShapeDtypeStruct((M, N_pad), x2d.dtype),
        grid_spec=pltpu.PrefetchScalarGridSpec(
            num_scalar_prefetch=0,
            grid=(grid_m,),
            in_specs=[
                pl.BlockSpec((tm, K), lambda i: (i, 0)),      # X tile (ragged edge masked)
                pl.BlockSpec((K, N_pad), lambda i: (0, 0)),   # resident W^T (DMA'd once)
                pl.BlockSpec((1, N_pad), lambda i: (0, 0)),   # resident bias (DMA'd once)
            ],
            out_specs=pl.BlockSpec((tm, N_pad), lambda i: (i, 0)),
        ),
        compiler_params=pltpu.CompilerParams(
            dimension_semantics=("parallel",),
            vmem_limit_bytes=_VMEM_LIMIT_BYTES,
        ),
        cost_estimate=cost,
    )(x2d, wt, b2d)


def _tiled_path(x2d, wt, b2d, M, K, N_pad):
    tm = min(512, _round_up(M, 8))
    tn = min(512, N_pad)
    tk = 512 if K >= 512 else K

    # Only the contraction dim ever needs real zero padding (garbage in the
    # reduction would corrupt the accumulation); M/N ragged tiles are masked.
    K_pad = _round_up(K, tk)
    if K_pad != K:
        x2d = jnp.pad(x2d, ((0, 0), (0, K_pad - K)))
        wt = jnp.pad(wt, ((0, K_pad - K), (0, 0)))

    grid = (_cdiv(M, tm), _cdiv(N_pad, tn), K_pad // tk)

    cost = pl.CostEstimate(
        flops=2 * M * K_pad * N_pad + M * N_pad,
        transcendentals=0,
        bytes_accessed=4 * M * K_pad + 2 * K_pad * N_pad + 4 * N_pad + 4 * M * N_pad,
    )

    return pl.pallas_call(
        _tiled_kernel,
        out_shape=jax.ShapeDtypeStruct((M, N_pad), x2d.dtype),
        grid_spec=pltpu.PrefetchScalarGridSpec(
            num_scalar_prefetch=0,
            grid=grid,
            in_specs=[
                pl.BlockSpec((tm, tk), lambda i, j, k: (i, k)),   # X tile
                pl.BlockSpec((tk, tn), lambda i, j, k: (k, j)),   # W^T tile
                pl.BlockSpec((1, tn), lambda i, j, k: (0, j)),    # bias tile
            ],
            out_specs=pl.BlockSpec((tm, tn), lambda i, j, k: (i, j)),
            scratch_shapes=[pltpu.VMEM((tm, tn), jnp.float32)],
        ),
        compiler_params=pltpu.CompilerParams(
            dimension_semantics=("parallel", "parallel", "arbitrary"),
            vmem_limit_bytes=_VMEM_LIMIT_BYTES,
        ),
        cost_estimate=cost,
    )(x2d, wt, b2d)


def _matmul_bias(x2d, wt, bias):
    """y = x2d @ wt + bias.   x2d: (M, K) f32, wt: (K, N) bf16, bias: (N,) f32."""
    M, K = x2d.shape
    _, N = wt.shape

    # Lane-dense output: pad only the small weight/bias along N to a multiple
    # of 128 so output stores are unmasked full-lane vst.
    N_pad = _round_up(N, 128)
    if N_pad != N:
        wt = jnp.pad(wt, ((0, 0), (0, N_pad - N)))
        bias = jnp.pad(bias, (0, N_pad - N))
    b2d = bias.reshape(1, N_pad).astype(jnp.float32)

    w_resident_bytes = 2 * K * N_pad * 2   # double-buffered bf16 W^T
    if w_resident_bytes <= _RESIDENT_W_LIMIT:
        out = _resident_path(x2d, wt, b2d, M, K, N_pad)
    else:
        out = _tiled_path(x2d, wt, b2d, M, K, N_pad)

    return out if N_pad == N else out[:, :N]


@functools.partial(jax.jit, static_argnames=("combine_dims",))
def linear_forward(x, weight, bias, combine_dims=False):
    """Forward of the PyTorch `Linear` wrapper module.

    x:      (..., input_size)
    weight: (n_neurons, input_size)   -- nn.Linear weight layout
    bias:   (n_neurons,)
    combine_dims: if True and x is 4D, merge dims 2 and 3 before the Linear.
    """
    if x.ndim == 4 and combine_dims:
        x = x.reshape(x.shape[0], x.shape[1], x.shape[2] * x.shape[3])
    lead = x.shape[:-1]
    k = x.shape[-1]
    n = weight.shape[0]
    x2d = x.reshape(-1, k).astype(jnp.float32)
    # The (N, K) -> (K, N) transpose + bf16 cast touches only the small weight
    # tensor; the big activation X is streamed from HBM in f32 and cast to
    # bf16 per-tile inside the kernel (no extra HBM pass over X).
    wt = weight.T.astype(jnp.bfloat16)
    y2d = _matmul_bias(x2d, wt, bias.astype(jnp.float32))
    return y2d.reshape(*lead, n)


def reference(x, weight, bias, combine_dims=False):
    """Pure-JAX reference mirroring the PyTorch forward (true f32 precision)."""
    if x.ndim == 4 and combine_dims:
        x = x.reshape(x.shape[0], x.shape[1], x.shape[2] * x.shape[3])
    y = jnp.einsum("...k,nk->...n", x, weight,
                   precision=jax.lax.Precision.HIGHEST)
    return y + bias


if __name__ == "__main__":
    key = jax.random.PRNGKey(0)
    B, T, K, N = 2, 8, 64, 128   # batch=2, seq=8, input_size=64, n_neurons=128

    k_x, k_w, k_b, k_x4 = jax.random.split(key, 4)
    x = jax.random.normal(k_x, (B, T, K), dtype=jnp.float32)

    # nn.Linear(K, N) init-style synthetic parameters.
    bound = 1.0 / (K ** 0.5)
    w = jax.random.uniform(k_w, (N, K), jnp.float32, -bound, bound)
    b = jax.random.uniform(k_b, (N,), jnp.float32, -bound, bound)

    # 3D path (the standard `Linear` usage).
    out = jax.block_until_ready(linear_forward(x, w, b))
    ref = reference(x, w, b)
    assert out.shape == (B, T, N)
    # Kernel feeds the MXU bf16 operands (f32 accumulation); compare loosely
    # against the true-f32 reference.
    assert jnp.allclose(out, ref, atol=5e-2, rtol=5e-2), (
        f"max abs diff {jnp.max(jnp.abs(out - ref))}"
    )

    # 4D + combine_dims path (input_size = 8 * 8 = 64).
    x4 = jax.random.normal(k_x4, (B, T, 8, 8), dtype=jnp.float32)
    out4 = jax.block_until_ready(linear_forward(x4, w, b, combine_dims=True))
    ref4 = reference(x4, w, b, combine_dims=True)
    assert out4.shape == (B, T, N)
    assert jnp.allclose(out4, ref4, atol=5e-2, rtol=5e-2), (
        f"max abs diff {jnp.max(jnp.abs(out4 - ref4))}"
    )

    print("KERNEL_OK")
</pallas_src>

<mosaic_0001>
module attributes {stable_mosaic.version = 11 : i64} {
  func.func @_resident_kernel(%arg0: i32, %arg1: memref<16x64xf32, #tpu.memory_space<vmem>>, %arg2: memref<64x128xbf16, #tpu.memory_space<vmem>>, %arg3: memref<1x128xf32, #tpu.memory_space<vmem>>, %arg4: memref<16x128xf32, #tpu.memory_space<vmem>>) attributes {dimension_semantics = [#tpu.dimension_semantics<parallel>], iteration_bounds = array<i64: 1>, scalar_prefetch = 0 : i64, scratch_operands = 0 : i64, tpu.core_type = #tpu.core_type<tc>, window_params = [{transform_indices = @transform_0, window_bounds = array<i64: 16, 64>}, {pipeline_mode = #tpu.pipeline_mode<synchronous>, transform_indices = @transform_1, window_bounds = array<i64: 64, 128>}, {pipeline_mode = #tpu.pipeline_mode<synchronous>, transform_indices = @transform_2, window_bounds = array<i64: 1, 128>}, {transform_indices = @transform_3, window_bounds = array<i64: 16, 128>}]} {
    %c0 = arith.constant 0 : index
    %c0_0 = arith.constant 0 : index
    %0 = vector.load %arg1[%c0, %c0_0] : memref<16x64xf32, #tpu.memory_space<vmem>>, vector<16x64xf32>
    %1 = arith.truncf %0 : vector<16x64xf32> to vector<16x64xbf16>
    %c0_1 = arith.constant 0 : index
    %c0_2 = arith.constant 0 : index
    %2 = vector.load %arg2[%c0_1, %c0_2] : memref<64x128xbf16, #tpu.memory_space<vmem>>, vector<64x128xbf16>
    %cst = arith.constant dense<0.000000e+00> : vector<16x128xf32>
    %3 = tpu.matmul %1, %2, %cst {dimension_numbers = #tpu.dot_dimension_numbers<[1], [0], [0], [1], [0, 0, 1, 1], [], []>} : vector<16x64xbf16>, vector<64x128xbf16>, vector<16x128xf32> -> vector<16x128xf32>
    %c0_3 = arith.constant 0 : index
    %c0_4 = arith.constant 0 : index
    %4 = vector.load %arg3[%c0_3, %c0_4] : memref<1x128xf32, #tpu.memory_space<vmem>>, vector<1x128xf32>
    %5 = vector.broadcast %4 : vector<1x128xf32> to vector<16x128xf32>
    %6 = arith.addf %3, %5 : vector<16x128xf32>
    %c0_5 = arith.constant 0 : index
    %c0_6 = arith.constant 0 : index
    %7 = vector.load %arg4[%c0_5, %c0_6] : memref<16x128xf32, #tpu.memory_space<vmem>>, vector<16x128xf32>
    tpu.vector_store %arg4[%c0_5, %c0_6], %6 {strides = array<i32>} : memref<16x128xf32, #tpu.memory_space<vmem>>, vector<16x128xf32>,
    return
  }
  func.func @transform_0(%arg0: i32) -> (i32, i32) {
    %c0_i32 = arith.constant 0 : i32
    %c0_i32_0 = arith.constant 0 : i32
    return %arg0, %c0_i32 : i32, i32
  }
  func.func @transform_1(%arg0: i32) -> (i32, i32) {
    %c0_i32 = arith.constant 0 : i32
    %c0_i32_0 = arith.constant 0 : i32
    %c0_i32_1 = arith.constant 0 : i32
    return %c0_i32, %c0_i32_0 : i32, i32
  }
  func.func @transform_2(%arg0: i32) -> (i32, i32) {
    %c0_i32 = arith.constant 0 : i32
    %c0_i32_0 = arith.constant 0 : i32
    %c0_i32_1 = arith.constant 0 : i32
    return %c0_i32, %c0_i32_0 : i32, i32
  }
  func.func @transform_3(%arg0: i32) -> (i32, i32) {
    %c0_i32 = arith.constant 0 : i32
    %c0_i32_0 = arith.constant 0 : i32
    return %arg0, %c0_i32 : i32, i32
  }
}

</mosaic_0001>

<llo_original>
// kernel: linear_forward.1
$region0: #{linear_forward.1}
  #allocation0 [shape = 'u32[]', space=smem, size = 0x4, offset = 0x4, fixed_abs, tag = 'smem constant byte address 0x4 - core index']
  #allocation1 [shape = 'u32[72,128]{1,0:T(1,128)}', space=vmem, size = 0x9000, scoped, tag = 'internal scratch']
  %s0 = inlined_call_operand.vmem [shape: f32[16,64], index: 0, kind: input, shape index: {}]
  %s1 = inlined_call_operand.vmem [shape: bf16[64,128], index: 1, kind: input, shape index: {}]
  %s2 = inlined_call_operand.vmem [shape: f32[1,128], index: 2, kind: input, shape index: {}]
  %s3 = inlined_call_operand.hbm [shape: f32[16,128], index: 3, kind: output, shape index: {}]
  %s4 = sld [smem:[#allocation0]]
  $region22: #{linear_forward.1} parent=0
    _
  %s6 = ssub.s32 1, %s4
  %s7 = scalar_select 0, %s6, %s4
  $region1: #{linear_forward.1} parent=0
    #allocation2 [shape = 'u8[8192]{0}', space=vmem, size = 0x2000, scoped, tag = 'output window, operand 0, single buffered']
    #allocation3 [shape = 's32[1]{0}', space=sflag, size = 0x4, scoped, tag = 'scoped memory for linear_forward.1']
    %8 = vsyncpa [#allocation3], 0
    // Predicated region
    $region2: #{linear_forward.1} parent=1 // pred_check
      _
    $region3: #{linear_forward.1} parent=1 // pred_check_branch
      %10 = sbr.rel (0) target = $region5
    $region4: #{linear_forward.1} parent=1 // pred_region
      _
    $region5: #{linear_forward.1} parent=1 // pred_fallthru
      _
    // Predicated region
    $region6: #{linear_forward.1} parent=1 // pred_check
      _
    $region7: #{linear_forward.1} parent=1 // pred_check_branch
      %12 = sbr.rel (0) target = $region9
    $region8: #{linear_forward.1} parent=1 // pred_region
      _
    $region9: #{linear_forward.1} parent=1 // pred_fallthru
      _
    // Predicated region
    $region10: #{linear_forward.1} parent=1 // pred_check
      _
    $region11: #{linear_forward.1} parent=1 // pred_check_branch
      %14 = sbr.rel (0) target = $region13
    $region12: #{linear_forward.1} parent=1 // pred_region
      _
    $region13: #{linear_forward.1} parent=1 // pred_fallthru
      _
    %v16 = vld [vmem:[%s0] sm:$0xff]
    %v17 = vld [vmem:[%s0 + $0x8] sm:$0xff]
    %v18 = vpack.c.bf16 %v17, %v16
    %v19 = vld [vmem:[%s1] sm:$0xf]
    %v20 = vld [vmem:[%s1 + $0x4] sm:$0xf]
    %v21 = vld [vmem:[%s1 + $0x8] sm:$0xf]
    %v22 = vld [vmem:[%s1 + $0xc] sm:$0xf]
    %v23 = vld [vmem:[%s1 + $0x10] sm:$0xf]
    %v24 = vld [vmem:[%s1 + $0x14] sm:$0xf]
    %v25 = vld [vmem:[%s1 + $0x18] sm:$0xf]
    %v26 = vld [vmem:[%s1 + $0x1c] sm:$0xf]
    %v27 = vld [vmem:[%s2] sm:$0x1]
    %v29 = vperm.slane %v27, 0
    %v39 = vunpack.c.l.b16 %v19
    %v40 = vunpack.c.l.b16 %v20
    %v41 = vunpack.c.l.b16 %v21
    %v42 = vunpack.c.l.b16 %v22
    %v43 = vunpack.c.l.b16 %v23
    %v44 = vunpack.c.l.b16 %v24
    %v45 = vunpack.c.l.b16 %v25
    %v46 = vunpack.c.l.b16 %v26
    %v47 = vpack.c.b16 %v40, %v39
    %v48 = vpack.c.b16 %v42, %v41
    %v49 = vpack.c.b16 %v44, %v43
    %v50 = vpack.c.b16 %v46, %v45
    %vm55 = vcmask 523264
    %v57 = vsel %vm55, %v18, 0
    %59 = vmatpush.bf16.msra.mxu0 0
    %60 = vmatpush.bf16.msra.mxu0 0
    %61 = vmatpush.bf16.msra.mxu0 0
    %62 = vmatpush.bf16.msra.mxu0 0
    %63 = vmatpush.bf16.msra.mxu0 %v50
    %64 = vmatpush.bf16.msra.mxu0 %v49
    %65 = vmatpush.bf16.msra.mxu0 %v48
    %66 = vmatpush.bf16.msra.mxu0 %v47
    %67 = vmatmul.bf16.gmra.mxu0 %v57
    %v68 = vpop.f32.mrf.mxu0
    %v69 = vadd.f32 %v29, %v68
    %v70 = vpop.f32.mrf.mxu0
    %v71 = vadd.f32 %v29, %v70
    %72 = vdwg.mxu0
    %73 = vst [vmem:[#allocation2] sm:$0xff] %v69
    %74 = vst [vmem:[#allocation2 + $0x8] sm:$0xff] %v71
    // Predicated region
    $region14: #{linear_forward.1} parent=1 // pred_check
      _
    $region15: #{linear_forward.1} parent=1 // pred_check_branch
      %76 = sbr.rel (0) target = $region17
    $region16: #{linear_forward.1} parent=1 // pred_region
      %78 = vsyncadd [#allocation3], 0
      %s79 = sshll.u32 [#allocation2], 4
      %s80 = int_to_ptr.vmem [resolvable:$true] %s79
      %s81 = sshll.u32 %s3, 4
      %s82 = int_to_ptr.hbm [resolvable:$true] %s81
      %87 = dma.vmem_to_hbm [thread:$0]  %s80, 256, %s82, [#allocation3], 128, 128, 8
    $region17: #{linear_forward.1} parent=1 // pred_fallthru
      _
    // Predicated region
    $region18: #{linear_forward.1} parent=1 // pred_check
      _
    $region19: #{linear_forward.1} parent=1 // pred_check_branch
      %89 = sbr.rel (0) target = $region21
    $region20: #{linear_forward.1} parent=1 // pred_region
      %91 = dma.done [#allocation3], 256
    $region21: #{linear_forward.1} parent=1 // pred_fallthru
      _
    %92 = vsyncpa [#allocation3], 1

</llo_original>
